<compile_context>
chip_gen: v7x
topology: tpu7x:2x2x1
jax: 0.10.0
libtpu: 0.0.40
codegen_flags: <defaults>
</compile_context>

<pallas_src>
import functools

import jax
import jax.numpy as jnp
from jax import lax
from jax.experimental import pallas as pl
from jax.experimental.pallas import tpu as pltpu


def _round_up(x, m):
    return ((x + m - 1) // m) * m


def _round_down(x, m):
    return (x // m) * m


def _vmem_capacity_bytes():
    """Physical VMEM per TensorCore; conservative fallback if query fails."""
    try:
        return int(pltpu.get_tpu_info().vmem_capacity_bytes)
    except Exception:
        return 64 << 20  # v7x per-TC size; safe lower bound for v5e/v6e too


def _linear_prob_kernel(x_ref, w_ref, b_ref, o_ref, acc_ref, *,
                        hw_total, spatial_tile, need_mask):
    # x_ref:  (TB, C, TS)  NCHW-native tile (spatial on the 128-lane axis)
    # w_ref:  (N_pad, C)   nn.Linear weight layout (no transpose materialized)
    # b_ref:  (1, N_pad)
    # o_ref:  (TB, N_pad)
    # acc_ref:(TB, C) f32  per-channel running sum
    k = pl.program_id(1)
    last_k = pl.num_programs(1) - 1

    @pl.when(k == 0)
    def _init():
        acc_ref[...] = jnp.zeros_like(acc_ref)

    def _accumulate(mask_tail):
        x = x_ref[...].astype(jnp.float32)                       # (TB, C, TS)
        if mask_tail:
            # Zero out padded spatial columns of the (partial) last tile only.
            col = lax.broadcasted_iota(jnp.int32, x.shape, 2)
            x = jnp.where(k * spatial_tile + col < hw_total, x, 0.0)
        acc_ref[...] += jnp.sum(x, axis=-1)                      # XLU lane reduce

    if need_mask:
        @pl.when(k == last_k)
        def _tail():
            _accumulate(True)

        @pl.when(k != last_k)
        def _full():
            _accumulate(False)
    else:
        _accumulate(False)

    @pl.when(k == last_k)
    def _epilogue():
        # Adaptive avg pool to (1,1): divide by the true H*W once.
        pooled = acc_ref[...] * (1.0 / float(hw_total))          # (TB, C)
        # pooled @ weight.T on the MXU, contracting on C without a transpose.
        logits = lax.dot_general(
            pooled, w_ref[...],
            dimension_numbers=(((1,), (1,)), ((), ())),
            preferred_element_type=jnp.float32,
        )                                                         # (TB, N_pad)
        o_ref[...] = (logits + b_ref[...]).astype(o_ref.dtype)


def linear_prob(x_nchw, weight, bias, *, batch_tile=None, spatial_tile=None):
    """Linear_prob.forward.

    x_nchw: (B, C, H, W) float32  (PyTorch NCHW input)
    weight: (class_num, in_channels) float32  (nn.Linear layout)
    bias:   (class_num,) float32
    returns (B, class_num) float32
    """
    B, C, H, W = x_nchw.shape
    N = weight.shape[0]
    S = H * W
    itemsize = jnp.dtype(x_nchw.dtype).itemsize

    # Native NCHW flattened spatially -> (B, C, S).  Free reshape (contiguous),
    # no extra HBM pass over x (unlike an NHWC transpose).
    x_bcs = x_nchw.reshape(B, C, S)

    # Lane-dense output: pad class dim to a multiple of 128 (weight/bias are
    # tiny relative to x, so padding them is negligible HBM traffic).
    n_pad = _round_up(max(N, 128), 128)
    w_pad = jnp.pad(weight, ((0, n_pad - N), (0, 0)))            # (N_pad, C)
    b_pad2 = jnp.pad(bias, (0, n_pad - N)).reshape(1, n_pad)     # (1, N_pad)

    # ---- generation-aware VMEM / tile budgets ------------------------------
    vmem_cap = _vmem_capacity_bytes()            # 128 MiB v5e/v6e, 64 MiB v7x
    vmem_budget = int(vmem_cap * 0.85)           # leave compiler headroom
    lane_min = S if S <= 128 else 128            # smallest legal spatial tile

    tb_cap = 64
    w_bytes = n_pad * C * 4
    fixed_bytes = (2 * w_bytes + 2 * n_pad * 4      # weight + bias (worst case 2x)
                   + 2 * tb_cap * n_pad * 4         # double-buffered output tile
                   + tb_cap * C * 4                 # accumulator scratch
                   + (4 << 20))                     # internal scratch slack
    x_buf_cap = (8 << 20) if vmem_cap <= (64 << 20) else (16 << 20)
    x_buf_budget = max(512 << 10, min((vmem_budget - fixed_bytes) // 2, x_buf_cap))

    # ---- batch tile (first block dim; output sublane dim -> 8-aligned) -----
    if batch_tile is not None:
        tb = int(batch_tile)
        if tb >= B:
            tb = B
        elif tb % 8 != 0:
            tb = max(8, _round_down(tb, 8)) if B > 8 else B
    elif B <= 8:
        tb = B                                    # full-dim block (always legal)
    else:
        # Multiple of 8, >= 2 batch blocks so both v7x TensorCores get work.
        tb = min(tb_cap, max(8, _round_down(B // 2, 8)))
        while tb > 8 and tb * C * lane_min * itemsize > x_buf_budget:
            tb -= 8

    # ---- spatial tile (lane axis: multiple of 128, or the full S) ----------
    if spatial_tile is not None:
        ts = int(spatial_tile)
        if ts < S:
            ts = max(128, _round_down(ts, 128))   # robust to bad user values
    else:
        ts = _round_down(x_buf_budget // max(1, tb * C * itemsize), 128)
        ts = max(lane_min, ts)
    if ts >= S:
        ts = S
    num_s = pl.cdiv(S, ts)
    need_mask = (S % ts) != 0

    grid = (pl.cdiv(B, tb), num_s)               # (batch parallel, spatial reduce)

    # VMEM limit: generation budget, bumped to the actual requirement if larger,
    # never above physical capacity.
    x_tile_bytes = tb * ts * C * itemsize
    required = (2 * x_tile_bytes + 2 * w_bytes + 2 * n_pad * 4
                + 2 * tb * n_pad * 4 + tb * C * 4 + (4 << 20))
    vmem_limit = int(min(max(vmem_budget, required), vmem_cap))

    cost = pl.CostEstimate(
        flops=B * C * S + 2 * B * C * N,         # pooling adds + matmul
        transcendentals=0,
        bytes_accessed=B * C * S * itemsize + (n_pad * C + n_pad + B * n_pad) * 4,
    )

    kernel = functools.partial(
        _linear_prob_kernel, hw_total=S, spatial_tile=ts, need_mask=need_mask)

    def _build(single_buffer_params):
        if single_buffer_params:
            # Constant index maps -> single buffer halves their VMEM footprint.
            w_spec = pl.BlockSpec((n_pad, C), lambda i, k: (0, 0),
                                  pipeline_mode=pl.Buffered(1))
            b_spec = pl.BlockSpec((1, n_pad), lambda i, k: (0, 0),
                                  pipeline_mode=pl.Buffered(1))
        else:
            w_spec = pl.BlockSpec((n_pad, C), lambda i, k: (0, 0))
            b_spec = pl.BlockSpec((1, n_pad), lambda i, k: (0, 0))
        return pl.pallas_call(
            kernel,
            out_shape=jax.ShapeDtypeStruct((B, n_pad), jnp.float32),
            grid_spec=pltpu.PrefetchScalarGridSpec(
                num_scalar_prefetch=0,
                grid=grid,
                in_specs=[
                    pl.BlockSpec((tb, C, ts), lambda i, k: (i, 0, k)),   # x tiles
                    w_spec,                                              # weight
                    b_spec,                                              # bias
                ],
                out_specs=pl.BlockSpec((tb, n_pad), lambda i, k: (i, 0)),
                scratch_shapes=[pltpu.VMEM((tb, C), jnp.float32)],       # acc
            ),
            compiler_params=pltpu.CompilerParams(
                dimension_semantics=("parallel", "arbitrary"),
                vmem_limit_bytes=vmem_limit,
            ),
            cost_estimate=cost,
        )

    try:
        out = _build(True)(x_bcs, w_pad, b_pad2)
    except Exception:
        # Fallback if single-buffered pipeline_mode is unsupported in this jax.
        out = _build(False)(x_bcs, w_pad, b_pad2)

    return out[:B, :N]


if __name__ == "__main__":
    key = jax.random.PRNGKey(0)

    def reference(x, w, b):
        return jnp.mean(x, axis=(2, 3)) @ w.T + b

    # --- case 1/2: required small shape; single-tile and multi-step paths ---
    B, C, H, W = 2, 4, 16, 16
    NUM_CLASSES = 16
    kx, kw, kb, kx2 = jax.random.split(key, 4)
    x = jax.random.normal(kx, (B, C, H, W), dtype=jnp.float32)
    weight = jax.random.normal(kw, (NUM_CLASSES, C), dtype=jnp.float32) * 0.02
    bias = jax.random.normal(kb, (NUM_CLASSES,), dtype=jnp.float32) * 0.01
    ref = reference(x, weight, bias)

    out_a = jax.block_until_ready(linear_prob(x, weight, bias))
    out_b = jax.block_until_ready(linear_prob(x, weight, bias, spatial_tile=128))
    assert out_a.shape == (B, NUM_CLASSES)
    assert out_b.shape == (B, NUM_CLASSES)
    assert jnp.allclose(out_a, ref, atol=1e-5, rtol=1e-5), "default-tile mismatch"
    assert jnp.allclose(out_b, ref, atol=1e-5, rtol=1e-5), "multi-tile mismatch"

    # --- case 3: ragged batch tile (B=10, tb=8) + masked spatial tail -------
    B2, C2, H2, W2 = 10, 4, 12, 12            # S=144: one 128 tile + masked 16 tail
    x2 = jax.random.normal(kx2, (B2, C2, H2, W2), dtype=jnp.float32)
    w2 = jax.random.normal(kw, (NUM_CLASSES, C2), dtype=jnp.float32) * 0.02
    ref2 = reference(x2, w2, bias)
    out_c = jax.block_until_ready(linear_prob(x2, w2, bias, spatial_tile=128))
    assert out_c.shape == (B2, NUM_CLASSES)
    assert jnp.allclose(out_c, ref2, atol=1e-5, rtol=1e-5), "ragged/masked mismatch"

    print("KERNEL_OK")
</pallas_src>

<mosaic_0001>
module attributes {stable_mosaic.version = 11 : i64} {
  func.func @_linear_prob_kernel(%arg0: i32, %arg1: i32, %arg2: memref<2x4x256xf32, #tpu.memory_space<vmem>>, %arg3: memref<128x4xf32, #tpu.memory_space<vmem>>, %arg4: memref<1x128xf32, #tpu.memory_space<vmem>>, %arg5: memref<2x128xf32, #tpu.memory_space<vmem>>, %arg6: memref<2x4xf32, #tpu.memory_space<vmem>>) attributes {dimension_semantics = [#tpu.dimension_semantics<parallel>, #tpu.dimension_semantics<arbitrary>], iteration_bounds = array<i64: 1, 1>, scalar_prefetch = 0 : i64, scratch_operands = 1 : i64, tpu.core_type = #tpu.core_type<tc>, window_params = [{transform_indices = @transform_0, window_bounds = array<i64: 2, 4, 256>}, {pipeline_mode = #tpu.pipeline_mode<synchronous>, transform_indices = @transform_1, window_bounds = array<i64: 128, 4>}, {pipeline_mode = #tpu.pipeline_mode<synchronous>, transform_indices = @transform_2, window_bounds = array<i64: 1, 128>}, {transform_indices = @transform_3, window_bounds = array<i64: 2, 128>}]} {
    %c0_i32 = arith.constant 0 : i32
    %0 = arith.cmpi eq, %arg1, %c0_i32 : i32
    %1 = arith.extui %0 : i1 to i32
    %c0_i32_0 = arith.constant 0 : i32
    %2 = arith.cmpi ne, %1, %c0_i32_0 : i32
    scf.if %2 {
      %cst_9 = arith.constant 0.000000e+00 : f32
      %11 = vector.broadcast %cst_9 : f32 to vector<2x4xf32>
      %c0_10 = arith.constant 0 : index
      %c0_11 = arith.constant 0 : index
      %12 = vector.load %arg6[%c0_10, %c0_11] : memref<2x4xf32, #tpu.memory_space<vmem>>, vector<2x4xf32>
      tpu.vector_store %arg6[%c0_10, %c0_11], %11 {strides = array<i32>} : memref<2x4xf32, #tpu.memory_space<vmem>>, vector<2x4xf32>,
    } else {
    }
    %c0 = arith.constant 0 : index
    %c0_1 = arith.constant 0 : index
    %c0_2 = arith.constant 0 : index
    %3 = vector.load %arg2[%c0, %c0_1, %c0_2] : memref<2x4x256xf32, #tpu.memory_space<vmem>>, vector<2x4x256xf32>
    %c0_3 = arith.constant 0 : index
    %c0_4 = arith.constant 0 : index
    %4 = vector.load %arg6[%c0_3, %c0_4] : memref<2x4xf32, #tpu.memory_space<vmem>>, vector<2x4xf32>
    %cst = arith.constant dense<0.000000e+00> : vector<2x4xf32>
    %5 = vector.multi_reduction <add>, %3, %cst [2] : vector<2x4x256xf32> to vector<2x4xf32>
    %6 = arith.addf %4, %5 : vector<2x4xf32>
    %c0_5 = arith.constant 0 : index
    %c0_6 = arith.constant 0 : index
    %7 = vector.load %arg6[%c0_5, %c0_6] : memref<2x4xf32, #tpu.memory_space<vmem>>, vector<2x4xf32>
    tpu.vector_store %arg6[%c0_5, %c0_6], %6 {strides = array<i32>} : memref<2x4xf32, #tpu.memory_space<vmem>>, vector<2x4xf32>,
    %c0_i32_7 = arith.constant 0 : i32
    %8 = arith.cmpi eq, %arg1, %c0_i32_7 : i32
    %9 = arith.extui %8 : i1 to i32
    %c0_i32_8 = arith.constant 0 : i32
    %10 = arith.cmpi ne, %9, %c0_i32_8 : i32
    scf.if %10 {
      %c0_9 = arith.constant 0 : index
      %c0_10 = arith.constant 0 : index
      %11 = vector.load %arg6[%c0_9, %c0_10] : memref<2x4xf32, #tpu.memory_space<vmem>>, vector<2x4xf32>
      %cst_11 = arith.constant 3.906250e-03 : f32
      %12 = vector.broadcast %cst_11 : f32 to vector<2x4xf32>
      %13 = arith.mulf %11, %12 : vector<2x4xf32>
      %c0_12 = arith.constant 0 : index
      %c0_13 = arith.constant 0 : index
      %14 = vector.load %arg3[%c0_12, %c0_13] : memref<128x4xf32, #tpu.memory_space<vmem>>, vector<128x4xf32>
      %cst_14 = arith.constant dense<0.000000e+00> : vector<2x128xf32>
      %15 = tpu.matmul %13, %14, %cst_14 {dimension_numbers = #tpu.dot_dimension_numbers<[1], [1], [0], [0], [0, 0, 1, 0], [], []>} : vector<2x4xf32>, vector<128x4xf32>, vector<2x128xf32> -> vector<2x128xf32>
      %c0_15 = arith.constant 0 : index
      %c0_16 = arith.constant 0 : index
      %16 = vector.load %arg4[%c0_15, %c0_16] : memref<1x128xf32, #tpu.memory_space<vmem>>, vector<1x128xf32>
      %17 = vector.broadcast %16 : vector<1x128xf32> to vector<2x128xf32>
      %18 = arith.addf %15, %17 : vector<2x128xf32>
      %c0_17 = arith.constant 0 : index
      %c0_18 = arith.constant 0 : index
      %19 = vector.load %arg5[%c0_17, %c0_18] : memref<2x128xf32, #tpu.memory_space<vmem>>, vector<2x128xf32>
      tpu.vector_store %arg5[%c0_17, %c0_18], %18 {strides = array<i32>} : memref<2x128xf32, #tpu.memory_space<vmem>>, vector<2x128xf32>,
    } else {
    }
    return
  }
  func.func @transform_0(%arg0: i32, %arg1: i32) -> (i32, i32, i32) {
    %c0_i32 = arith.constant 0 : i32
    %c0_i32_0 = arith.constant 0 : i32
    return %arg0, %c0_i32, %arg1 : i32, i32, i32
  }
  func.func @transform_1(%arg0: i32, %arg1: i32) -> (i32, i32) {
    %c0_i32 = arith.constant 0 : i32
    %c0_i32_0 = arith.constant 0 : i32
    %c0_i32_1 = arith.constant 0 : i32
    return %c0_i32, %c0_i32_0 : i32, i32
  }
  func.func @transform_2(%arg0: i32, %arg1: i32) -> (i32, i32) {
    %c0_i32 = arith.constant 0 : i32
    %c0_i32_0 = arith.constant 0 : i32
    %c0_i32_1 = arith.constant 0 : i32
    return %c0_i32, %c0_i32_0 : i32, i32
  }
  func.func @transform_3(%arg0: i32, %arg1: i32) -> (i32, i32) {
    %c0_i32 = arith.constant 0 : i32
    %c0_i32_0 = arith.constant 0 : i32
    return %arg0, %c0_i32 : i32, i32
  }
}

module attributes {stable_mosaic.version = 11 : i64} {
  func.func @_linear_prob_kernel(%arg0: i32, %arg1: i32, %arg2: memref<2x4x256xf32, #tpu.memory_space<vmem>>, %arg3: memref<128x4xf32, #tpu.memory_space<vmem>>, %arg4: memref<1x128xf32, #tpu.memory_space<vmem>>, %arg5: memref<2x128xf32, #tpu.memory_space<vmem>>, %arg6: memref<2x4xf32, #tpu.memory_space<vmem>>) attributes {dimension_semantics = [#tpu.dimension_semantics<parallel>, #tpu.dimension_semantics<arbitrary>], iteration_bounds = array<i64: 1, 1>, scalar_prefetch = 0 : i64, scratch_operands = 1 : i64, tpu.core_type = #tpu.core_type<tc>, window_params = [{transform_indices = @transform_0, window_bounds = array<i64: 2, 4, 256>}, {pipeline_mode = #tpu.pipeline_mode<synchronous>, transform_indices = @transform_1, window_bounds = array<i64: 128, 4>}, {pipeline_mode = #tpu.pipeline_mode<synchronous>, transform_indices = @transform_2, window_bounds = array<i64: 1, 128>}, {transform_indices = @transform_3, window_bounds = array<i64: 2, 128>}]} {
    %c0_i32 = arith.constant 0 : i32
    %0 = arith.cmpi eq, %arg1, %c0_i32 : i32
    %1 = arith.extui %0 : i1 to i32
    %c0_i32_0 = arith.constant 0 : i32
    %2 = arith.cmpi ne, %1, %c0_i32_0 : i32
    scf.if %2 {
      %cst_9 = arith.constant 0.000000e+00 : f32
      %11 = vector.broadcast %cst_9 : f32 to vector<2x4xf32>
      %c0_10 = arith.constant 0 : index
      %c0_11 = arith.constant 0 : index
      %12 = vector.load %arg6[%c0_10, %c0_11] : memref<2x4xf32, #tpu.memory_space<vmem>>, vector<2x4xf32>
      tpu.vector_store %arg6[%c0_10, %c0_11], %11 {strides = array<i32>} : memref<2x4xf32, #tpu.memory_space<vmem>>, vector<2x4xf32>,
    } else {
    }
    %c0 = arith.constant 0 : index
    %c0_1 = arith.constant 0 : index
    %c0_2 = arith.constant 0 : index
    %3 = vector.load %arg2[%c0, %c0_1, %c0_2] : memref<2x4x256xf32, #tpu.memory_space<vmem>>, vector<2x4x256xf32>
    %c0_3 = arith.constant 0 : index
    %c0_4 = arith.constant 0 : index
    %4 = vector.load %arg6[%c0_3, %c0_4] : memref<2x4xf32, #tpu.memory_space<vmem>>, vector<2x4xf32>
    %cst = arith.constant dense<0.000000e+00> : vector<2x4xf32>
    %5 = vector.multi_reduction <add>, %3, %cst [2] : vector<2x4x256xf32> to vector<2x4xf32>
    %6 = arith.addf %4, %5 : vector<2x4xf32>
    %c0_5 = arith.constant 0 : index
    %c0_6 = arith.constant 0 : index
    %7 = vector.load %arg6[%c0_5, %c0_6] : memref<2x4xf32, #tpu.memory_space<vmem>>, vector<2x4xf32>
    tpu.vector_store %arg6[%c0_5, %c0_6], %6 {strides = array<i32>} : memref<2x4xf32, #tpu.memory_space<vmem>>, vector<2x4xf32>,
    %c0_i32_7 = arith.constant 0 : i32
    %8 = arith.cmpi eq, %arg1, %c0_i32_7 : i32
    %9 = arith.extui %8 : i1 to i32
    %c0_i32_8 = arith.constant 0 : i32
    %10 = arith.cmpi ne, %9, %c0_i32_8 : i32
    scf.if %10 {
      %c0_9 = arith.constant 0 : index
      %c0_10 = arith.constant 0 : index
      %11 = vector.load %arg6[%c0_9, %c0_10] : memref<2x4xf32, #tpu.memory_space<vmem>>, vector<2x4xf32>
      %cst_11 = arith.constant 3.906250e-03 : f32
      %12 = vector.broadcast %cst_11 : f32 to vector<2x4xf32>
      %13 = arith.mulf %11, %12 : vector<2x4xf32>
      %c0_12 = arith.constant 0 : index
      %c0_13 = arith.constant 0 : index
      %14 = vector.load %arg3[%c0_12, %c0_13] : memref<128x4xf32, #tpu.memory_space<vmem>>, vector<128x4xf32>
      %cst_14 = arith.constant dense<0.000000e+00> : vector<2x128xf32>
      %15 = tpu.matmul %13, %14, %cst_14 {dimension_numbers = #tpu.dot_dimension_numbers<[1], [1], [0], [0], [0, 0, 1, 0], [], []>} : vector<2x4xf32>, vector<128x4xf32>, vector<2x128xf32> -> vector<2x128xf32>
      %c0_15 = arith.constant 0 : index
      %c0_16 = arith.constant 0 : index
      %16 = vector.load %arg4[%c0_15, %c0_16] : memref<1x128xf32, #tpu.memory_space<vmem>>, vector<1x128xf32>
      %17 = vector.broadcast %16 : vector<1x128xf32> to vector<2x128xf32>
      %18 = arith.addf %15, %17 : vector<2x128xf32>
      %c0_17 = arith.constant 0 : index
      %c0_18 = arith.constant 0 : index
      %19 = vector.load %arg5[%c0_17, %c0_18] : memref<2x128xf32, #tpu.memory_space<vmem>>, vector<2x128xf32>
      tpu.vector_store %arg5[%c0_17, %c0_18], %18 {strides = array<i32>} : memref<2x128xf32, #tpu.memory_space<vmem>>, vector<2x128xf32>,
    } else {
    }
    return
  }
  func.func @transform_0(%arg0: i32, %arg1: i32) -> (i32, i32, i32) {
    %c0_i32 = arith.constant 0 : i32
    %c0_i32_0 = arith.constant 0 : i32
    return %arg0, %c0_i32, %arg1 : i32, i32, i32
  }
  func.func @transform_1(%arg0: i32, %arg1: i32) -> (i32, i32) {
    %c0_i32 = arith.constant 0 : i32
    %c0_i32_0 = arith.constant 0 : i32
    %c0_i32_1 = arith.constant 0 : i32
    return %c0_i32, %c0_i32_0 : i32, i32
  }
  func.func @transform_2(%arg0: i32, %arg1: i32) -> (i32, i32) {
    %c0_i32 = arith.constant 0 : i32
    %c0_i32_0 = arith.constant 0 : i32
    %c0_i32_1 = arith.constant 0 : i32
    return %c0_i32, %c0_i32_0 : i32, i32
  }
  func.func @transform_3(%arg0: i32, %arg1: i32) -> (i32, i32) {
    %c0_i32 = arith.constant 0 : i32
    %c0_i32_0 = arith.constant 0 : i32
    return %arg0, %c0_i32 : i32, i32
  }
}

</mosaic_0001>

<llo_original>
// kernel: tpu_custom_call.1
$region0: #{tpu_custom_call.1}
  #allocation0 [shape = 'u32[]', space=smem, size = 0x4, offset = 0x4, fixed_abs, tag = 'smem constant byte address 0x4 - core index']
  #allocation1 [shape = 'u32[144,128]{1,0:T(1,128)}', space=vmem, size = 0x12000, scoped, tag = 'internal scratch']
  #allocation2 [shape = 'f32[2,4]{1,0:T(2,128)}', space=vmem, size = 0x400, scoped, tag = 'scratch operand']
  %s0 = inlined_call_operand.vmem [shape: f32[2,4,256], index: 0, kind: input, shape index: {}]
  %s1 = inlined_call_operand.vmem [shape: f32[128,4], index: 1, kind: input, shape index: {}]
  %s2 = inlined_call_operand.vmem [shape: f32[1,128], index: 2, kind: input, shape index: {}]
  %s3 = inlined_call_operand.hbm [shape: f32[2,128], index: 3, kind: output, shape index: {}]
  %s4 = sld [smem:[#allocation0]]
  $region30: #{tpu_custom_call.1} parent=0
    _
  %s6 = ssub.s32 1, %s4
  %s7 = scalar_select 0, %s6, %s4
  $region1: #{tpu_custom_call.1} parent=0
    #allocation3 [shape = 'u8[1024]{0}', space=vmem, size = 0x400, scoped, tag = 'output window, operand 0, single buffered']
    #allocation4 [shape = 's32[1]{0}', space=sflag, size = 0x4, scoped, tag = 'scoped memory for tpu_custom_call.1']
    %8 = vsyncpa [#allocation4], 0
    // Predicated region
    $region2: #{tpu_custom_call.1} parent=1 // pred_check
      _
    $region3: #{tpu_custom_call.1} parent=1 // pred_check_branch
      %10 = sbr.rel (0) target = $region5
    $region4: #{tpu_custom_call.1} parent=1 // pred_region
      _
    $region5: #{tpu_custom_call.1} parent=1 // pred_fallthru
      _
    // Predicated region
    $region6: #{tpu_custom_call.1} parent=1 // pred_check
      _
    $region7: #{tpu_custom_call.1} parent=1 // pred_check_branch
      %12 = sbr.rel (0) target = $region9
    $region8: #{tpu_custom_call.1} parent=1 // pred_region
      _
    $region9: #{tpu_custom_call.1} parent=1 // pred_fallthru
      _
    // Predicated region
    $region10: #{tpu_custom_call.1} parent=1 // pred_check
      _
    $region11: #{tpu_custom_call.1} parent=1 // pred_check_branch
      %14 = sbr.rel (0) target = $region13
    $region12: #{tpu_custom_call.1} parent=1 // pred_region
      _
    $region13: #{tpu_custom_call.1} parent=1 // pred_fallthru
      _
    %p15 = scmp.eq.s32.totalorder 0, 0
    // Predicated region
    $region14: #{tpu_custom_call.1} parent=1 // pred_check
      %p16 = pneg %p15
    $region15: #{tpu_custom_call.1} parent=1 // pred_check_branch
      %18 = sbr.rel (%p16) target = $region17
    $region16: #{tpu_custom_call.1} parent=1 // pred_region
      %vm19 = vcmask 25600
      %20 = vst.msk [vmem:[#allocation2] sm:$0x3] %vm19, 0.0
    $region17: #{tpu_custom_call.1} parent=1 // pred_fallthru
      _
    %v21 = vld [vmem:[%s0] sm:$0xff]
    %v22 = vld [vmem:[%s0 + $0x8] sm:$0xff]
    %v23 = vld [vmem:[#allocation2] sm:$0x3]
    %v26 = vcombine.high %v21, %v21
    %v27 = vcombine.high %v22, %v22
    %vm30 = vcmask 1043456
    %v31 = vsel %vm30, %v21, 0.0
    %v32 = vsel %vm30, %v26, 0.0
    %v33 = vadd.f32 %v31, %v32
    %34 = vadd.xlane.f32.xlu0 %v33
    %v35 = vpop.xlane.xlu0 %34
    %v36 = vsel %vm30, %v22, 0.0
    %v37 = vsel %vm30, %v27, 0.0
    %v38 = vadd.f32 %v36, %v37
    %39 = vadd.xlane.f32.xlu0 %v38
    %v40 = vpop.xlane.xlu0 %39
    %v43 = vlaneseq
    %v44 = vand.u32 %v43, 127
    %v45 = vlaneseq
    %v46 = vshrl.u32 %v45, 7
    %v47 = vsub.s32 %v44, %v46
    %v48 = vrot.slane %v35, %v47
    %v49 = vlaneseq
    %v50 = vshrl.u32 %v49, 7
    %v51 = vsub.s32 %v44, %v50
    %v52 = vrot.slane %v40, %v51
    %vm53 = vcmask 1041409
    %v54 = vsel %vm53, %v52, %v48
    %v56 = vadd.f32 %v23, %v54
    %vm57 = vcmask 25600
    %58 = vst.msk [vmem:[#allocation2] sm:$0x3] %vm57, %v56
    // Predicated region
    $region18: #{tpu_custom_call.1} parent=1 // pred_check
      %p59 = pneg %p15
    $region19: #{tpu_custom_call.1} parent=1 // pred_check_branch
      %61 = sbr.rel (%p59) target = $region21
    $region20: #{tpu_custom_call.1} parent=1 // pred_region
      %v62 = vld [vmem:[#allocation2] sm:$0x3]
      %v63 = vmul.f32 %v62, 0.00390625
      %v64 = vld [vmem:[%s1] sm:$0xff]
      %v65 = vld [vmem:[%s1 + $0x8] sm:$0xff]
      %v66 = vld [vmem:[%s1 + $0x10] sm:$0xff]
      %v67 = vld [vmem:[%s1 + $0x18] sm:$0xff]
      %v68 = vld [vmem:[%s1 + $0x20] sm:$0xff]
      %v69 = vld [vmem:[%s1 + $0x28] sm:$0xff]
      %v70 = vld [vmem:[%s1 + $0x30] sm:$0xff]
      %v71 = vld [vmem:[%s1 + $0x38] sm:$0xff]
      %v72 = vld [vmem:[%s1 + $0x40] sm:$0xff]
      %v73 = vld [vmem:[%s1 + $0x48] sm:$0xff]
      %v74 = vld [vmem:[%s1 + $0x50] sm:$0xff]
      %v75 = vld [vmem:[%s1 + $0x58] sm:$0xff]
      %v76 = vld [vmem:[%s1 + $0x60] sm:$0xff]
      %v77 = vld [vmem:[%s1 + $0x68] sm:$0xff]
      %v78 = vld [vmem:[%s1 + $0x70] sm:$0xff]
      %v79 = vld [vmem:[%s1 + $0x78] sm:$0xff]
      %v80 = vld [vmem:[%s2] sm:$0x1]
      %v82 = vlaneseq
      %v83 = vshrl.u32 %v82, 7
      %v84 = vsub.s32 0, %v83
      %v85 = vrot.slane %v80, %v84
      %vm87 = vcmask 31744
      %v89 = vsel %vm87, %v63, 0
      %v92 = vsel %vm87, %v64, 0
      %v95 = vsel %vm87, %v65, 0
      %v98 = vsel %vm87, %v66, 0
      %v101 = vsel %vm87, %v67, 0
      %v104 = vsel %vm87, %v68, 0
      %v107 = vsel %vm87, %v69, 0
      %v110 = vsel %vm87, %v70, 0
      %v113 = vsel %vm87, %v71, 0
      %v116 = vsel %vm87, %v72, 0
      %v119 = vsel %vm87, %v73, 0
      %v122 = vsel %vm87, %v74, 0
      %v125 = vsel %vm87, %v75, 0
      %v128 = vsel %vm87, %v76, 0
      %v131 = vsel %vm87, %v77, 0
      %v134 = vsel %vm87, %v78, 0
      %v137 = vsel %vm87, %v79, 0
      %139 = vmatprep.subr.mxu0 0.0
      %140 = vmatpush1.xpose.msra.mxu0 %v92
      %141 = vmatprep.subr.mxu0 0.0
      %142 = vmatpush1.xpose.msra.mxu0 %v95
      %143 = vmatprep.subr.mxu0 0.0
      %144 = vmatpush1.xpose.msra.mxu0 %v98
      %145 = vmatprep.subr.mxu0 0.0
      %146 = vmatpush1.xpose.msra.mxu0 %v101
      %147 = vmatprep.subr.mxu0 0.0
      %148 = vmatpush1.xpose.msra.mxu0 %v104
      %149 = vmatprep.subr.mxu0 0.0
      %150 = vmatpush1.xpose.msra.mxu0 %v107
      %151 = vmatprep.subr.mxu0 0.0
      %152 = vmatpush1.xpose.msra.mxu0 %v110
      %153 = vmatprep.subr.mxu0 0.0
      %154 = vmatpush1.xpose.msra.mxu0 %v113
      %155 = vmatprep.subr.mxu0 0.0
      %156 = vmatpush1.xpose.msra.mxu0 %v116
      %157 = vmatprep.subr.mxu0 0.0
      %158 = vmatpush1.xpose.msra.mxu0 %v119
      %159 = vmatprep.subr.mxu0 0.0
      %160 = vmatpush1.xpose.msra.mxu0 %v122
      %161 = vmatprep.subr.mxu0 0.0
      %162 = vmatpush1.xpose.msra.mxu0 %v125
      %163 = vmatprep.subr.mxu0 0.0
      %164 = vmatpush1.xpose.msra.mxu0 %v128
      %165 = vmatprep.subr.mxu0 0.0
      %166 = vmatpush1.xpose.msra.mxu0 %v131
      %167 = vmatprep.subr.mxu0 0.0
      %168 = vmatpush1.xpose.msra.mxu0 %v134
      %169 = vmatprep.subr.mxu0 0.0
      %170 = vmatpush1.xpose.msra.mxu0 %v137
      %171 = vmatprep.subr.mxu0 0.0
      %172 = vmatpush1.xpose.msra.mxu0 0.0
      %173 = vmatprep.subr.mxu0 0.0
      %174 = vmatpush1.xpose.msra.mxu0 0.0
      %175 = vmatprep.subr.mxu0 0.0
      %176 = vmatpush1.xpose.msra.mxu0 0.0
      %177 = vmatprep.subr.mxu0 0.0
      %178 = vmatpush1.xpose.msra.mxu0 0.0
      %179 = vmatprep.subr.mxu0 0.0
      %180 = vmatpush1.xpose.msra.mxu0 0.0
      %181 = vmatprep.subr.mxu0 0.0
      %182 = vmatpush1.xpose.msra.mxu0 0.0
      %183 = vmatprep.subr.mxu0 0.0
      %184 = vmatpush1.xpose.msra.mxu0 0.0
      %185 = vmatprep.subr.mxu0 0.0
      %186 = vmatpush1.xpose.msra.mxu0 0.0
      %187 = vmatprep.subr.mxu0 0.0
      %188 = vmatpush1.xpose.msra.mxu0 0.0
      %189 = vmatprep.subr.mxu0 0.0
      %190 = vmatpush1.xpose.msra.mxu0 0.0
      %191 = vmatprep.subr.mxu0 0.0
      %192 = vmatpush1.xpose.msra.mxu0 0.0
      %193 = vmatprep.subr.mxu0 0.0
      %194 = vmatpush1.xpose.msra.mxu0 0.0
      %195 = vmatprep.subr.mxu0 0.0
      %196 = vmatpush1.xpose.msra.mxu0 0.0
      %197 = vmatprep.subr.mxu0 0.0
      %198 = vmatpush1.xpose.msra.mxu0 0.0
      %199 = vmatprep.subr.mxu0 0.0
      %200 = vmatpush1.xpose.msra.mxu0 0.0
      %201 = vmatprep.subr.mxu0 0.0
      %202 = vmatpush1.xpose.msra.mxu0 0.0
      %203 = vmatprep.mubr.f32.mxu0 0.0
      %204 = vmatmul.mubr.f32.gmra.mrb[0].mxu0 %v89
      %v205 = vpop.f32.mrb[0].mxu0
      %v206 = vadd.f32 %v85, %v205
      %v207 = vpop.f32.mrb[0].mxu0
      %208 = vdwg.mxu0
      %209 = vst [vmem:[#allocation3] sm:$0x3] %v206
    $region21: #{tpu_custom_call.1} parent=1 // pred_fallthru
      _
    // Predicated region
    $region22: #{tpu_custom_call.1} parent=1 // pred_check
      _
    $region23: #{tpu_custom_call.1} parent=1 // pred_check_branch
      %211 = sbr.rel (0) target = $region25
    $region24: #{tpu_custom_call.1} parent=1 // pred_region
      %s213 = ssub.s32 32, 32
      %214 = vsyncadd [#allocation4], %s213
      %s216 = sshll.u32 [#allocation3], 4
      %s217 = int_to_ptr.vmem [resolvable:$true] %s216
      %219 = dma.vmem_to_hbm [thread:$0]  %s217, 32, %s3, [#allocation4]
    $region25: #{tpu_custom_call.1} parent=1 // pred_fallthru
      _
    // Predicated region
    $region26: #{tpu_custom_call.1} parent=1 // pred_check
      _
    $region27: #{tpu_custom_call.1} parent=1 // pred_check_branch
      %221 = sbr.rel (0) target = $region29
    $region28: #{tpu_custom_call.1} parent=1 // pred_region
      %222 = dma.done [#allocation4], 32
    $region29: #{tpu_custom_call.1} parent=1 // pred_fallthru
      _
    %223 = vsyncpa [#allocation4], 1

// kernel: tpu_custom_call.1
$region0: #{tpu_custom_call.1}
  #allocation0 [shape = 'u32[]', space=smem, size = 0x4, offset = 0x4, fixed_abs, tag = 'smem constant byte address 0x4 - core index']
  #allocation1 [shape = 'u32[144,128]{1,0:T(1,128)}', space=vmem, size = 0x12000, scoped, tag = 'internal scratch']
  #allocation2 [shape = 'f32[2,4]{1,0:T(2,128)}', space=vmem, size = 0x400, scoped, tag = 'scratch operand']
  %s0 = inlined_call_operand.vmem [shape: f32[2,4,256], index: 0, kind: input, shape index: {}]
  %s1 = inlined_call_operand.vmem [shape: f32[128,4], index: 1, kind: input, shape index: {}]
  %s2 = inlined_call_operand.vmem [shape: f32[1,128], index: 2, kind: input, shape index: {}]
  %s3 = inlined_call_operand.hbm [shape: f32[2,128], index: 3, kind: output, shape index: {}]
  %s4 = sld [smem:[#allocation0]]
  $region30: #{tpu_custom_call.1} parent=0
    _
  %s6 = ssub.s32 1, %s4
  %s7 = scalar_select 0, %s6, %s4
  $region1: #{tpu_custom_call.1} parent=0
    #allocation3 [shape = 'u8[1024]{0}', space=vmem, size = 0x400, scoped, tag = 'output window, operand 0, single buffered']
    #allocation4 [shape = 's32[1]{0}', space=sflag, size = 0x4, scoped, tag = 'scoped memory for tpu_custom_call.1']
    %8 = vsyncpa [#allocation4], 0
    // Predicated region
    $region2: #{tpu_custom_call.1} parent=1 // pred_check
      _
    $region3: #{tpu_custom_call.1} parent=1 // pred_check_branch
      %10 = sbr.rel (0) target = $region5
    $region4: #{tpu_custom_call.1} parent=1 // pred_region
      _
    $region5: #{tpu_custom_call.1} parent=1 // pred_fallthru
      _
    // Predicated region
    $region6: #{tpu_custom_call.1} parent=1 // pred_check
      _
    $region7: #{tpu_custom_call.1} parent=1 // pred_check_branch
      %12 = sbr.rel (0) target = $region9
    $region8: #{tpu_custom_call.1} parent=1 // pred_region
      _
    $region9: #{tpu_custom_call.1} parent=1 // pred_fallthru
      _
    // Predicated region
    $region10: #{tpu_custom_call.1} parent=1 // pred_check
      _
    $region11: #{tpu_custom_call.1} parent=1 // pred_check_branch
      %14 = sbr.rel (0) target = $region13
    $region12: #{tpu_custom_call.1} parent=1 // pred_region
      _
    $region13: #{tpu_custom_call.1} parent=1 // pred_fallthru
      _
    %p15 = scmp.eq.s32.totalorder 0, 0
    // Predicated region
    $region14: #{tpu_custom_call.1} parent=1 // pred_check
      %p16 = pneg %p15
    $region15: #{tpu_custom_call.1} parent=1 // pred_check_branch
      %18 = sbr.rel (%p16) target = $region17
    $region16: #{tpu_custom_call.1} parent=1 // pred_region
      %vm19 = vcmask 25600
      %20 = vst.msk [vmem:[#allocation2] sm:$0x3] %vm19, 0.0
    $region17: #{tpu_custom_call.1} parent=1 // pred_fallthru
      _
    %v21 = vld [vmem:[%s0] sm:$0xff]
    %v22 = vld [vmem:[%s0 + $0x8] sm:$0xff]
    %v23 = vld [vmem:[#allocation2] sm:$0x3]
    %v26 = vcombine.high %v21, %v21
    %v27 = vcombine.high %v22, %v22
    %vm30 = vcmask 1043456
    %v31 = vsel %vm30, %v21, 0.0
    %v32 = vsel %vm30, %v26, 0.0
    %v33 = vadd.f32 %v31, %v32
    %34 = vadd.xlane.f32.xlu0 %v33
    %v35 = vpop.xlane.xlu0 %34
    %v36 = vsel %vm30, %v22, 0.0
    %v37 = vsel %vm30, %v27, 0.0
    %v38 = vadd.f32 %v36, %v37
    %39 = vadd.xlane.f32.xlu0 %v38
    %v40 = vpop.xlane.xlu0 %39
    %v43 = vlaneseq
    %v44 = vand.u32 %v43, 127
    %v45 = vlaneseq
    %v46 = vshrl.u32 %v45, 7
    %v47 = vsub.s32 %v44, %v46
    %v48 = vrot.slane %v35, %v47
    %v49 = vlaneseq
    %v50 = vshrl.u32 %v49, 7
    %v51 = vsub.s32 %v44, %v50
    %v52 = vrot.slane %v40, %v51
    %vm53 = vcmask 1041409
    %v54 = vsel %vm53, %v52, %v48
    %v56 = vadd.f32 %v23, %v54
    %vm57 = vcmask 25600
    %58 = vst.msk [vmem:[#allocation2] sm:$0x3] %vm57, %v56
    // Predicated region
    $region18: #{tpu_custom_call.1} parent=1 // pred_check
      %p59 = pneg %p15
    $region19: #{tpu_custom_call.1} parent=1 // pred_check_branch
      %61 = sbr.rel (%p59) target = $region21
    $region20: #{tpu_custom_call.1} parent=1 // pred_region
      %v62 = vld [vmem:[#allocation2] sm:$0x3]
      %v63 = vmul.f32 %v62, 0.00390625
      %v64 = vld [vmem:[%s1] sm:$0xff]
      %v65 = vld [vmem:[%s1 + $0x8] sm:$0xff]
      %v66 = vld [vmem:[%s1 + $0x10] sm:$0xff]
      %v67 = vld [vmem:[%s1 + $0x18] sm:$0xff]
      %v68 = vld [vmem:[%s1 + $0x20] sm:$0xff]
      %v69 = vld [vmem:[%s1 + $0x28] sm:$0xff]
      %v70 = vld [vmem:[%s1 + $0x30] sm:$0xff]
      %v71 = vld [vmem:[%s1 + $0x38] sm:$0xff]
      %v72 = vld [vmem:[%s1 + $0x40] sm:$0xff]
      %v73 = vld [vmem:[%s1 + $0x48] sm:$0xff]
      %v74 = vld [vmem:[%s1 + $0x50] sm:$0xff]
      %v75 = vld [vmem:[%s1 + $0x58] sm:$0xff]
      %v76 = vld [vmem:[%s1 + $0x60] sm:$0xff]
      %v77 = vld [vmem:[%s1 + $0x68] sm:$0xff]
      %v78 = vld [vmem:[%s1 + $0x70] sm:$0xff]
      %v79 = vld [vmem:[%s1 + $0x78] sm:$0xff]
      %v80 = vld [vmem:[%s2] sm:$0x1]
      %v82 = vlaneseq
      %v83 = vshrl.u32 %v82, 7
      %v84 = vsub.s32 0, %v83
      %v85 = vrot.slane %v80, %v84
      %vm87 = vcmask 31744
      %v89 = vsel %vm87, %v63, 0
      %v92 = vsel %vm87, %v64, 0
      %v95 = vsel %vm87, %v65, 0
      %v98 = vsel %vm87, %v66, 0
      %v101 = vsel %vm87, %v67, 0
      %v104 = vsel %vm87, %v68, 0
      %v107 = vsel %vm87, %v69, 0
      %v110 = vsel %vm87, %v70, 0
      %v113 = vsel %vm87, %v71, 0
      %v116 = vsel %vm87, %v72, 0
      %v119 = vsel %vm87, %v73, 0
      %v122 = vsel %vm87, %v74, 0
      %v125 = vsel %vm87, %v75, 0
      %v128 = vsel %vm87, %v76, 0
      %v131 = vsel %vm87, %v77, 0
      %v134 = vsel %vm87, %v78, 0
      %v137 = vsel %vm87, %v79, 0
      %139 = vmatprep.subr.mxu0 0.0
      %140 = vmatpush1.xpose.msra.mxu0 %v92
      %141 = vmatprep.subr.mxu0 0.0
      %142 = vmatpush1.xpose.msra.mxu0 %v95
      %143 = vmatprep.subr.mxu0 0.0
      %144 = vmatpush1.xpose.msra.mxu0 %v98
      %145 = vmatprep.subr.mxu0 0.0
      %146 = vmatpush1.xpose.msra.mxu0 %v101
      %147 = vmatprep.subr.mxu0 0.0
      %148 = vmatpush1.xpose.msra.mxu0 %v104
      %149 = vmatprep.subr.mxu0 0.0
      %150 = vmatpush1.xpose.msra.mxu0 %v107
      %151 = vmatprep.subr.mxu0 0.0
      %152 = vmatpush1.xpose.msra.mxu0 %v110
      %153 = vmatprep.subr.mxu0 0.0
      %154 = vmatpush1.xpose.msra.mxu0 %v113
      %155 = vmatprep.subr.mxu0 0.0
      %156 = vmatpush1.xpose.msra.mxu0 %v116
      %157 = vmatprep.subr.mxu0 0.0
      %158 = vmatpush1.xpose.msra.mxu0 %v119
      %159 = vmatprep.subr.mxu0 0.0
      %160 = vmatpush1.xpose.msra.mxu0 %v122
      %161 = vmatprep.subr.mxu0 0.0
      %162 = vmatpush1.xpose.msra.mxu0 %v125
      %163 = vmatprep.subr.mxu0 0.0
      %164 = vmatpush1.xpose.msra.mxu0 %v128
      %165 = vmatprep.subr.mxu0 0.0
      %166 = vmatpush1.xpose.msra.mxu0 %v131
      %167 = vmatprep.subr.mxu0 0.0
      %168 = vmatpush1.xpose.msra.mxu0 %v134
      %169 = vmatprep.subr.mxu0 0.0
      %170 = vmatpush1.xpose.msra.mxu0 %v137
      %171 = vmatprep.subr.mxu0 0.0
      %172 = vmatpush1.xpose.msra.mxu0 0.0
      %173 = vmatprep.subr.mxu0 0.0
      %174 = vmatpush1.xpose.msra.mxu0 0.0
      %175 = vmatprep.subr.mxu0 0.0
      %176 = vmatpush1.xpose.msra.mxu0 0.0
      %177 = vmatprep.subr.mxu0 0.0
      %178 = vmatpush1.xpose.msra.mxu0 0.0
      %179 = vmatprep.subr.mxu0 0.0
      %180 = vmatpush1.xpose.msra.mxu0 0.0
      %181 = vmatprep.subr.mxu0 0.0
      %182 = vmatpush1.xpose.msra.mxu0 0.0
      %183 = vmatprep.subr.mxu0 0.0
      %184 = vmatpush1.xpose.msra.mxu0 0.0
      %185 = vmatprep.subr.mxu0 0.0
      %186 = vmatpush1.xpose.msra.mxu0 0.0
      %187 = vmatprep.subr.mxu0 0.0
      %188 = vmatpush1.xpose.msra.mxu0 0.0
      %189 = vmatprep.subr.mxu0 0.0
      %190 = vmatpush1.xpose.msra.mxu0 0.0
      %191 = vmatprep.subr.mxu0 0.0
      %192 = vmatpush1.xpose.msra.mxu0 0.0
      %193 = vmatprep.subr.mxu0 0.0
      %194 = vmatpush1.xpose.msra.mxu0 0.0
      %195 = vmatprep.subr.mxu0 0.0
      %196 = vmatpush1.xpose.msra.mxu0 0.0
      %197 = vmatprep.subr.mxu0 0.0
      %198 = vmatpush1.xpose.msra.mxu0 0.0
      %199 = vmatprep.subr.mxu0 0.0
      %200 = vmatpush1.xpose.msra.mxu0 0.0
      %201 = vmatprep.subr.mxu0 0.0
      %202 = vmatpush1.xpose.msra.mxu0 0.0
      %203 = vmatprep.mubr.f32.mxu0 0.0
      %204 = vmatmul.mubr.f32.gmra.mrb[0].mxu0 %v89
      %v205 = vpop.f32.mrb[0].mxu0
      %v206 = vadd.f32 %v85, %v205
      %v207 = vpop.f32.mrb[0].mxu0
      %208 = vdwg.mxu0
      %209 = vst [vmem:[#allocation3] sm:$0x3] %v206
    $region21: #{tpu_custom_call.1} parent=1 // pred_fallthru
      _
    // Predicated region
    $region22: #{tpu_custom_call.1} parent=1 // pred_check
      _
    $region23: #{tpu_custom_call.1} parent=1 // pred_check_branch
      %211 = sbr.rel (0) target = $region25
    $region24: #{tpu_custom_call.1} parent=1 // pred_region
      %s213 = ssub.s32 32, 32
      %214 = vsyncadd [#allocation4], %s213
      %s216 = sshll.u32 [#allocation3], 4
      %s217 = int_to_ptr.vmem [resolvable:$true] %s216
      %219 = dma.vmem_to_hbm [thread:$0]  %s217, 32, %s3, [#allocation4]
    $region25: #{tpu_custom_call.1} parent=1 // pred_fallthru
      _
    // Predicated region
    $region26: #{tpu_custom_call.1} parent=1 // pred_check
      _
    $region27: #{tpu_custom_call.1} parent=1 // pred_check_branch
      %221 = sbr.rel (0) target = $region29
    $region28: #{tpu_custom_call.1} parent=1 // pred_region
      %222 = dma.done [#allocation4], 32
    $region29: #{tpu_custom_call.1} parent=1 // pred_fallthru
      _
    %223 = vsyncpa [#allocation4], 1

</llo_original>
